<compile_context>
chip_gen: v7x
topology: tpu7x:2x2x1
jax: 0.10.0
libtpu: 0.0.40
codegen_flags: <defaults>
</compile_context>

<pallas_src>
import functools
import math

import jax
import jax.numpy as jnp
from jax.experimental import pallas as pl
from jax.experimental.pallas import tpu as pltpu


# ---------------------------------------------------------------------------
# Fused Pallas kernel: full VAE forward
# ---------------------------------------------------------------------------
def _apply_act(y, act):
    if act == "relu":
        return jnp.maximum(y, 0.0)
    if act == "sigmoid":
        return jax.nn.sigmoid(y)
    if act == "tanh":
        return jnp.tanh(y)
    return y  # linear / None


def _vae_fused_kernel(*refs, n_enc, n_dec, latent_dim, final_act):
    """Ref order:
       inputs : x, (enc_w, enc_b)*n_enc, w_mv, b_mv, eps, (dec_w, dec_b)*n_dec
       outputs: x_hat, zpack  (zpack = [z | z_mean | z_log_var] along lanes)
    """
    idx = 0
    x_ref = refs[idx]; idx += 1

    enc = []
    for _ in range(n_enc):
        enc.append((refs[idx], refs[idx + 1])); idx += 2

    wmv_ref = refs[idx]; bmv_ref = refs[idx + 1]; eps_ref = refs[idx + 2]
    idx += 3

    dec = []
    for _ in range(n_dec):
        dec.append((refs[idx], refs[idx + 1])); idx += 2

    xhat_ref = refs[idx]
    zpack_ref = refs[idx + 1]

    # ----- encoder hidden stack (Linear + ReLU), all in VMEM / vregs -----
    h = x_ref[...]
    for (w_ref, b_ref) in enc:
        h = jnp.dot(h, w_ref[...], preferred_element_type=jnp.float32)
        h = jnp.maximum(h + b_ref[...], 0.0)

    # ----- fused z_mean / z_log_var matmul + reparameterization -----
    mlv = jnp.dot(h, wmv_ref[...], preferred_element_type=jnp.float32)
    mlv = mlv + bmv_ref[...]
    mu = mlv[:, :latent_dim]
    lv = mlv[:, latent_dim:]
    z = mu + jnp.exp(0.5 * lv) * eps_ref[...]

    # ----- decoder stack -----
    d = z
    for i, (w_ref, b_ref) in enumerate(dec):
        d = jnp.dot(d, w_ref[...], preferred_element_type=jnp.float32)
        d = d + b_ref[...]
        if i == n_dec - 1:
            d = _apply_act(d, final_act)
        else:
            d = jnp.maximum(d, 0.0)

    # ----- single lane-denser stores -----
    xhat_ref[...] = d.astype(xhat_ref.dtype)
    zpack_ref[...] = jnp.concatenate([z, mu, lv], axis=1).astype(zpack_ref.dtype)


def vae_forward(params, x, eps):
    """Fused forward: x -> (x_hat, latent, z_mean, z_log_var)."""
    enc = params["enc"]
    dec = params["dec"]
    wmv, bmv = params["z_mv"]
    final_act = params["final_act"]

    B, D0 = x.shape
    L = wmv.shape[1] // 2
    n_enc, n_dec = len(enc), len(dec)

    flat_inputs = [x]
    for (w, b) in enc:
        flat_inputs += [w, b]
    flat_inputs += [wmv, bmv, eps]
    for (w, b) in dec:
        flat_inputs += [w, b]

    kernel = functools.partial(
        _vae_fused_kernel,
        n_enc=n_enc, n_dec=n_dec, latent_dim=L, final_act=final_act)

    out_shapes = (
        jax.ShapeDtypeStruct((B, D0), jnp.float32),      # x_hat
        jax.ShapeDtypeStruct((B, 3 * L), jnp.float32),   # [z | mu | log_var]
    )

    x_hat, zpack = pl.pallas_call(
        kernel,
        out_shape=out_shapes,
        in_specs=[pl.BlockSpec(memory_space=pltpu.MemorySpace.VMEM)]
        * len(flat_inputs),
        out_specs=(pl.BlockSpec(memory_space=pltpu.MemorySpace.VMEM),) * 2,
    )(*flat_inputs)

    z = zpack[:, :L]
    z_mean = zpack[:, L:2 * L]
    z_log_var = zpack[:, 2 * L:]
    return x_hat, z, z_mean, z_log_var


# ---------------------------------------------------------------------------
# Parameter construction (mirrors nn.Linear + xavier_normal, zero biases)
# ---------------------------------------------------------------------------
def xavier_normal(key, fan_in, fan_out):
    std = math.sqrt(2.0 / (fan_in + fan_out))
    return std * jax.random.normal(key, (fan_in, fan_out), dtype=jnp.float32)


def init_vae_params(key, dimensions, decoder_final_activation="sigmoid"):
    embedding_dim = dimensions[0]
    hidden_dims = dimensions[1:-1]
    latent_dim = dimensions[-1]

    keys = iter(jax.random.split(key, 64))

    def lin(din, dout):
        # bias pre-shaped (1, dout) so kernels never reshape per call
        return (xavier_normal(next(keys), din, dout),
                jnp.zeros((1, dout), jnp.float32))

    # encoder hidden stack: emb -> h0 -> h1 -> ... (ReLU each)
    enc = []
    dims_in = [embedding_dim] + list(hidden_dims[:-1])
    for din, dout in zip(dims_in, hidden_dims):
        enc.append(lin(din, dout))

    # z_mean / z_log_var concatenated along the output axis: (H, 2L)
    wm, bm = lin(hidden_dims[-1], latent_dim)
    wv, bv = lin(hidden_dims[-1], latent_dim)
    z_mv = (jnp.concatenate([wm, wv], axis=1),
            jnp.concatenate([bm, bv], axis=1))

    # decoder: latent -> h[-1] (ReLU) -> reversed hidden ... -> embedding
    rev = list(reversed(hidden_dims))
    dec = [lin(latent_dim, rev[0])]
    for i in range(len(rev)):
        if i == len(rev) - 1:
            dec.append(lin(rev[i], embedding_dim))
        else:
            dec.append(lin(rev[i], rev[i + 1]))

    return {
        "enc": enc,
        "z_mv": z_mv,
        "dec": dec,
        "final_act": decoder_final_activation,
    }


# ---------------------------------------------------------------------------
# Pure-JAX reference (same math, XLA ops) for a sanity check
# ---------------------------------------------------------------------------
def vae_forward_ref(params, x, eps):
    h = x
    for (w, b) in params["enc"]:
        h = jnp.maximum(h @ w + b, 0.0)
    wmv, bmv = params["z_mv"]
    mlv = h @ wmv + bmv
    L = wmv.shape[1] // 2
    mu, lv = mlv[:, :L], mlv[:, L:]
    z = mu + jnp.exp(0.5 * lv) * eps
    d = z
    n_dec = len(params["dec"])
    for i, (w, b) in enumerate(params["dec"]):
        d = d @ w + b
        d = _apply_act(d, params["final_act"] if i == n_dec - 1 else "relu")
    return d, z, mu, lv


# ---------------------------------------------------------------------------
if __name__ == "__main__":
    # dimensions analogous to [784, 500, 500, 2000, 10], scaled down
    dimensions = [64, 32, 32, 16, 8]
    batch = 8

    key = jax.random.PRNGKey(0)
    k_param, k_x, k_eps = jax.random.split(key, 3)

    params = init_vae_params(k_param, dimensions,
                             decoder_final_activation="sigmoid")

    # input in [0,1] like MNIST-style data
    x = jax.random.uniform(k_x, (batch, dimensions[0]), dtype=jnp.float32)
    # reparameterization noise (torch.randn equivalent), supplied from host
    eps = jax.random.normal(k_eps, (batch, dimensions[-1]), dtype=jnp.float32)

    x_hat, latent, z_mean, z_log_var = vae_forward(params, x, eps)
    jax.block_until_ready((x_hat, latent, z_mean, z_log_var))

    assert x_hat.shape == (batch, dimensions[0])
    assert latent.shape == (batch, dimensions[-1])
    assert z_mean.shape == (batch, dimensions[-1])
    assert z_log_var.shape == (batch, dimensions[-1])

    # correctness vs. pure-JAX reference (loose tol: MXU f32 path)
    r_xhat, r_z, r_mu, r_lv = vae_forward_ref(params, x, eps)
    assert jnp.allclose(x_hat, r_xhat, atol=1e-3, rtol=1e-2)
    assert jnp.allclose(latent, r_z, atol=1e-3, rtol=1e-2)
    assert jnp.allclose(z_mean, r_mu, atol=1e-3, rtol=1e-2)
    assert jnp.allclose(z_log_var, r_lv, atol=1e-3, rtol=1e-2)
    assert bool(jnp.all(jnp.isfinite(x_hat)))

    print("KERNEL_OK")
</pallas_src>

<mosaic_0001>
module attributes {stable_mosaic.version = 11 : i64} {
  func.func @_vae_fused_kernel(%arg0: memref<8x64xf32, #tpu.memory_space<vmem>>, %arg1: memref<64x32xf32, #tpu.memory_space<vmem>>, %arg2: memref<1x32xf32, #tpu.memory_space<vmem>>, %arg3: memref<32x32xf32, #tpu.memory_space<vmem>>, %arg4: memref<1x32xf32, #tpu.memory_space<vmem>>, %arg5: memref<32x16xf32, #tpu.memory_space<vmem>>, %arg6: memref<1x16xf32, #tpu.memory_space<vmem>>, %arg7: memref<16x16xf32, #tpu.memory_space<vmem>>, %arg8: memref<1x16xf32, #tpu.memory_space<vmem>>, %arg9: memref<8x8xf32, #tpu.memory_space<vmem>>, %arg10: memref<8x16xf32, #tpu.memory_space<vmem>>, %arg11: memref<1x16xf32, #tpu.memory_space<vmem>>, %arg12: memref<16x32xf32, #tpu.memory_space<vmem>>, %arg13: memref<1x32xf32, #tpu.memory_space<vmem>>, %arg14: memref<32x32xf32, #tpu.memory_space<vmem>>, %arg15: memref<1x32xf32, #tpu.memory_space<vmem>>, %arg16: memref<32x64xf32, #tpu.memory_space<vmem>>, %arg17: memref<1x64xf32, #tpu.memory_space<vmem>>, %arg18: memref<8x64xf32, #tpu.memory_space<vmem>>, %arg19: memref<8x24xf32, #tpu.memory_space<vmem>>) attributes {dimension_semantics = [], scalar_prefetch = 0 : i64, scratch_operands = 0 : i64, tpu.core_type = #tpu.core_type<tc>} {
    %c0 = arith.constant 0 : index
    %c0_0 = arith.constant 0 : index
    %0 = vector.load %arg0[%c0, %c0_0] : memref<8x64xf32, #tpu.memory_space<vmem>>, vector<8x64xf32>
    %c0_1 = arith.constant 0 : index
    %c0_2 = arith.constant 0 : index
    %1 = vector.load %arg1[%c0_1, %c0_2] : memref<64x32xf32, #tpu.memory_space<vmem>>, vector<64x32xf32>
    %cst = arith.constant dense<0.000000e+00> : vector<8x32xf32>
    %2 = tpu.matmul %0, %1, %cst {dimension_numbers = #tpu.dot_dimension_numbers<[1], [0], [0], [1], [0, 0, 1, 1], [], []>} : vector<8x64xf32>, vector<64x32xf32>, vector<8x32xf32> -> vector<8x32xf32>
    %c0_3 = arith.constant 0 : index
    %c0_4 = arith.constant 0 : index
    %3 = vector.load %arg2[%c0_3, %c0_4] : memref<1x32xf32, #tpu.memory_space<vmem>>, vector<1x32xf32>
    %4 = vector.broadcast %3 : vector<1x32xf32> to vector<8x32xf32>
    %5 = arith.addf %2, %4 : vector<8x32xf32>
    %cst_5 = arith.constant 0.000000e+00 : f32
    %6 = vector.broadcast %cst_5 : f32 to vector<8x32xf32>
    %7 = arith.maximumf %5, %6 : vector<8x32xf32>
    %c0_6 = arith.constant 0 : index
    %c0_7 = arith.constant 0 : index
    %8 = vector.load %arg3[%c0_6, %c0_7] : memref<32x32xf32, #tpu.memory_space<vmem>>, vector<32x32xf32>
    %cst_8 = arith.constant dense<0.000000e+00> : vector<8x32xf32>
    %9 = tpu.matmul %7, %8, %cst_8 {dimension_numbers = #tpu.dot_dimension_numbers<[1], [0], [0], [1], [0, 0, 1, 1], [], []>} : vector<8x32xf32>, vector<32x32xf32>, vector<8x32xf32> -> vector<8x32xf32>
    %c0_9 = arith.constant 0 : index
    %c0_10 = arith.constant 0 : index
    %10 = vector.load %arg4[%c0_9, %c0_10] : memref<1x32xf32, #tpu.memory_space<vmem>>, vector<1x32xf32>
    %11 = vector.broadcast %10 : vector<1x32xf32> to vector<8x32xf32>
    %12 = arith.addf %9, %11 : vector<8x32xf32>
    %cst_11 = arith.constant 0.000000e+00 : f32
    %13 = vector.broadcast %cst_11 : f32 to vector<8x32xf32>
    %14 = arith.maximumf %12, %13 : vector<8x32xf32>
    %c0_12 = arith.constant 0 : index
    %c0_13 = arith.constant 0 : index
    %15 = vector.load %arg5[%c0_12, %c0_13] : memref<32x16xf32, #tpu.memory_space<vmem>>, vector<32x16xf32>
    %cst_14 = arith.constant dense<0.000000e+00> : vector<8x16xf32>
    %16 = tpu.matmul %14, %15, %cst_14 {dimension_numbers = #tpu.dot_dimension_numbers<[1], [0], [0], [1], [0, 0, 1, 1], [], []>} : vector<8x32xf32>, vector<32x16xf32>, vector<8x16xf32> -> vector<8x16xf32>
    %c0_15 = arith.constant 0 : index
    %c0_16 = arith.constant 0 : index
    %17 = vector.load %arg6[%c0_15, %c0_16] : memref<1x16xf32, #tpu.memory_space<vmem>>, vector<1x16xf32>
    %18 = vector.broadcast %17 : vector<1x16xf32> to vector<8x16xf32>
    %19 = arith.addf %16, %18 : vector<8x16xf32>
    %cst_17 = arith.constant 0.000000e+00 : f32
    %20 = vector.broadcast %cst_17 : f32 to vector<8x16xf32>
    %21 = arith.maximumf %19, %20 : vector<8x16xf32>
    %c0_18 = arith.constant 0 : index
    %c0_19 = arith.constant 0 : index
    %22 = vector.load %arg7[%c0_18, %c0_19] : memref<16x16xf32, #tpu.memory_space<vmem>>, vector<16x16xf32>
    %cst_20 = arith.constant dense<0.000000e+00> : vector<8x16xf32>
    %23 = tpu.matmul %21, %22, %cst_20 {dimension_numbers = #tpu.dot_dimension_numbers<[1], [0], [0], [1], [0, 0, 1, 1], [], []>} : vector<8x16xf32>, vector<16x16xf32>, vector<8x16xf32> -> vector<8x16xf32>
    %c0_21 = arith.constant 0 : index
    %c0_22 = arith.constant 0 : index
    %24 = vector.load %arg8[%c0_21, %c0_22] : memref<1x16xf32, #tpu.memory_space<vmem>>, vector<1x16xf32>
    %25 = vector.broadcast %24 : vector<1x16xf32> to vector<8x16xf32>
    %26 = arith.addf %23, %25 : vector<8x16xf32>
    %27 = vector.extract_strided_slice %26 {offsets = [0, 0], sizes = [8, 8], strides = [1, 1]} : vector<8x16xf32> to vector<8x8xf32>
    %28 = vector.extract_strided_slice %26 {offsets = [0, 8], sizes = [8, 8], strides = [1, 1]} : vector<8x16xf32> to vector<8x8xf32>
    %cst_23 = arith.constant 5.000000e-01 : f32
    %29 = vector.broadcast %cst_23 : f32 to vector<8x8xf32>
    %30 = arith.mulf %29, %28 : vector<8x8xf32>
    %31 = math.exp %30 : vector<8x8xf32>
    %c0_24 = arith.constant 0 : index
    %c0_25 = arith.constant 0 : index
    %32 = vector.load %arg9[%c0_24, %c0_25] : memref<8x8xf32, #tpu.memory_space<vmem>>, vector<8x8xf32>
    %33 = arith.mulf %31, %32 : vector<8x8xf32>
    %34 = arith.addf %27, %33 : vector<8x8xf32>
    %c0_26 = arith.constant 0 : index
    %c0_27 = arith.constant 0 : index
    %35 = vector.load %arg10[%c0_26, %c0_27] : memref<8x16xf32, #tpu.memory_space<vmem>>, vector<8x16xf32>
    %cst_28 = arith.constant dense<0.000000e+00> : vector<8x16xf32>
    %36 = tpu.matmul %34, %35, %cst_28 {dimension_numbers = #tpu.dot_dimension_numbers<[1], [0], [0], [1], [0, 0, 1, 1], [], []>} : vector<8x8xf32>, vector<8x16xf32>, vector<8x16xf32> -> vector<8x16xf32>
    %c0_29 = arith.constant 0 : index
    %c0_30 = arith.constant 0 : index
    %37 = vector.load %arg11[%c0_29, %c0_30] : memref<1x16xf32, #tpu.memory_space<vmem>>, vector<1x16xf32>
    %38 = vector.broadcast %37 : vector<1x16xf32> to vector<8x16xf32>
    %39 = arith.addf %36, %38 : vector<8x16xf32>
    %cst_31 = arith.constant 0.000000e+00 : f32
    %40 = vector.broadcast %cst_31 : f32 to vector<8x16xf32>
    %41 = arith.maximumf %39, %40 : vector<8x16xf32>
    %c0_32 = arith.constant 0 : index
    %c0_33 = arith.constant 0 : index
    %42 = vector.load %arg12[%c0_32, %c0_33] : memref<16x32xf32, #tpu.memory_space<vmem>>, vector<16x32xf32>
    %cst_34 = arith.constant dense<0.000000e+00> : vector<8x32xf32>
    %43 = tpu.matmul %41, %42, %cst_34 {dimension_numbers = #tpu.dot_dimension_numbers<[1], [0], [0], [1], [0, 0, 1, 1], [], []>} : vector<8x16xf32>, vector<16x32xf32>, vector<8x32xf32> -> vector<8x32xf32>
    %c0_35 = arith.constant 0 : index
    %c0_36 = arith.constant 0 : index
    %44 = vector.load %arg13[%c0_35, %c0_36] : memref<1x32xf32, #tpu.memory_space<vmem>>, vector<1x32xf32>
    %45 = vector.broadcast %44 : vector<1x32xf32> to vector<8x32xf32>
    %46 = arith.addf %43, %45 : vector<8x32xf32>
    %cst_37 = arith.constant 0.000000e+00 : f32
    %47 = vector.broadcast %cst_37 : f32 to vector<8x32xf32>
    %48 = arith.maximumf %46, %47 : vector<8x32xf32>
    %c0_38 = arith.constant 0 : index
    %c0_39 = arith.constant 0 : index
    %49 = vector.load %arg14[%c0_38, %c0_39] : memref<32x32xf32, #tpu.memory_space<vmem>>, vector<32x32xf32>
    %cst_40 = arith.constant dense<0.000000e+00> : vector<8x32xf32>
    %50 = tpu.matmul %48, %49, %cst_40 {dimension_numbers = #tpu.dot_dimension_numbers<[1], [0], [0], [1], [0, 0, 1, 1], [], []>} : vector<8x32xf32>, vector<32x32xf32>, vector<8x32xf32> -> vector<8x32xf32>
    %c0_41 = arith.constant 0 : index
    %c0_42 = arith.constant 0 : index
    %51 = vector.load %arg15[%c0_41, %c0_42] : memref<1x32xf32, #tpu.memory_space<vmem>>, vector<1x32xf32>
    %52 = vector.broadcast %51 : vector<1x32xf32> to vector<8x32xf32>
    %53 = arith.addf %50, %52 : vector<8x32xf32>
    %cst_43 = arith.constant 0.000000e+00 : f32
    %54 = vector.broadcast %cst_43 : f32 to vector<8x32xf32>
    %55 = arith.maximumf %53, %54 : vector<8x32xf32>
    %c0_44 = arith.constant 0 : index
    %c0_45 = arith.constant 0 : index
    %56 = vector.load %arg16[%c0_44, %c0_45] : memref<32x64xf32, #tpu.memory_space<vmem>>, vector<32x64xf32>
    %cst_46 = arith.constant dense<0.000000e+00> : vector<8x64xf32>
    %57 = tpu.matmul %55, %56, %cst_46 {dimension_numbers = #tpu.dot_dimension_numbers<[1], [0], [0], [1], [0, 0, 1, 1], [], []>} : vector<8x32xf32>, vector<32x64xf32>, vector<8x64xf32> -> vector<8x64xf32>
    %c0_47 = arith.constant 0 : index
    %c0_48 = arith.constant 0 : index
    %58 = vector.load %arg17[%c0_47, %c0_48] : memref<1x64xf32, #tpu.memory_space<vmem>>, vector<1x64xf32>
    %59 = vector.broadcast %58 : vector<1x64xf32> to vector<8x64xf32>
    %60 = arith.addf %57, %59 : vector<8x64xf32>
    %61 = arith.negf %60 : vector<8x64xf32>
    %62 = math.exp %61 : vector<8x64xf32>
    %cst_49 = arith.constant 1.000000e+00 : f32
    %63 = vector.broadcast %cst_49 : f32 to vector<8x64xf32>
    %64 = arith.addf %63, %62 : vector<8x64xf32>
    %65 = arith.divf %63, %64 : vector<8x64xf32>
    %c0_50 = arith.constant 0 : index
    %c0_51 = arith.constant 0 : index
    %66 = vector.load %arg18[%c0_50, %c0_51] : memref<8x64xf32, #tpu.memory_space<vmem>>, vector<8x64xf32>
    tpu.vector_store %arg18[%c0_50, %c0_51], %65 {strides = array<i32>} : memref<8x64xf32, #tpu.memory_space<vmem>>, vector<8x64xf32>,
    %67 = tpu.concatenate %34, %27, %28 in 1 : vector<8x8xf32>, vector<8x8xf32>, vector<8x8xf32> -> vector<8x24xf32>
    %c0_52 = arith.constant 0 : index
    %c0_53 = arith.constant 0 : index
    %68 = vector.load %arg19[%c0_52, %c0_53] : memref<8x24xf32, #tpu.memory_space<vmem>>, vector<8x24xf32>
    tpu.vector_store %arg19[%c0_52, %c0_53], %67 {strides = array<i32>} : memref<8x24xf32, #tpu.memory_space<vmem>>, vector<8x24xf32>,
    return
  }
}

</mosaic_0001>

<llo_original>
// kernel: tpu_custom_call.1
$region0: #{tpu_custom_call.1}
  #allocation0 [shape = 'u32[]', space=smem, size = 0x4, offset = 0x4, fixed_abs, tag = 'smem constant byte address 0x4 - core index']
  #allocation1 [shape = 'u32[144,128]{1,0:T(1,128)}', space=vmem, size = 0x12000, scoped, tag = 'internal scratch']
  %s0 = inlined_call_operand.hbm [shape: f32[8,64], index: 0, kind: input, shape index: {}]
  %s1 = inlined_call_operand.vmem [shape: f32[64,32], index: 1, kind: input, shape index: {}]
  %s2 = inlined_call_operand.vmem [shape: f32[1,32], index: 2, kind: input, shape index: {}]
  %s3 = inlined_call_operand.vmem [shape: f32[32,32], index: 3, kind: input, shape index: {}]
  %s4 = inlined_call_operand.vmem [shape: f32[1,32], index: 4, kind: input, shape index: {}]
  %s5 = inlined_call_operand.vmem [shape: f32[32,16], index: 5, kind: input, shape index: {}]
  %s6 = inlined_call_operand.hbm [shape: f32[1,16], index: 6, kind: input, shape index: {}]
  %s7 = inlined_call_operand.vmem [shape: f32[16,16], index: 7, kind: input, shape index: {}]
  %s8 = inlined_call_operand.hbm [shape: f32[1,16], index: 8, kind: input, shape index: {}]
  %s9 = inlined_call_operand.hbm [shape: f32[8,8], index: 9, kind: input, shape index: {}]
  %s10 = inlined_call_operand.hbm [shape: f32[8,16], index: 10, kind: input, shape index: {}]
  %s11 = inlined_call_operand.vmem [shape: f32[1,16], index: 11, kind: input, shape index: {}]
  %s12 = inlined_call_operand.vmem [shape: f32[16,32], index: 12, kind: input, shape index: {}]
  %s13 = inlined_call_operand.vmem [shape: f32[1,32], index: 13, kind: input, shape index: {}]
  %s14 = inlined_call_operand.vmem [shape: f32[32,32], index: 14, kind: input, shape index: {}]
  %s15 = inlined_call_operand.vmem [shape: f32[1,32], index: 15, kind: input, shape index: {}]
  %s16 = inlined_call_operand.vmem [shape: f32[32,64], index: 16, kind: input, shape index: {}]
  %s17 = inlined_call_operand.vmem [shape: f32[1,64], index: 17, kind: input, shape index: {}]
  %s18 = inlined_call_operand.hbm [shape: f32[8,64], index: 18, kind: output, shape index: {0}]
  %s19 = inlined_call_operand.hbm [shape: f32[8,24], index: 19, kind: output, shape index: {1}]
  %20 = xla_tuple %s18, %s19
  %s21 = sld [smem:[#allocation0]]
  $region110: #{tpu_custom_call.1} parent=0
    _
  %s23 = ssub.s32 1, %s21
  %s24 = scalar_select 0, %s23, %s21
  $region1: #{tpu_custom_call.1} parent=0
    #allocation2 [shape = 'u8[4096]{0}', space=vmem, size = 0x1000, scoped, tag = 'input window, operand 0, single buffered']
    #allocation3 [shape = 's32[1]{0}', space=sflag, size = 0x4, scoped, tag = 'scoped memory for tpu_custom_call.1']
    #allocation4 [shape = 's32[1]{0}', space=sflag, size = 0x4, scoped, tag = 'scoped memory for tpu_custom_call.1']
    #allocation5 [shape = 'u8[512]{0}', space=vmem, size = 0x400, scoped, tag = 'input window, operand 6, single buffered']
    #allocation6 [shape = 's32[1]{0}', space=sflag, size = 0x4, scoped, tag = 'scoped memory for tpu_custom_call.1']
    #allocation7 [shape = 'u8[512]{0}', space=vmem, size = 0x400, scoped, tag = 'input window, operand 8, single buffered']
    #allocation8 [shape = 'u8[4096]{0}', space=vmem, size = 0x1000, scoped, tag = 'input window, operand 9, single buffered']
    #allocation9 [shape = 's32[1]{0}', space=sflag, size = 0x4, scoped, tag = 'scoped memory for tpu_custom_call.1']
    #allocation10 [shape = 'u8[4096]{0}', space=vmem, size = 0x1000, scoped, tag = 'input window, operand 10, single buffered']
    #allocation11 [shape = 'u8[4096]{0}', space=vmem, size = 0x1000, scoped, tag = 'output window, operand 0, single buffered']
    #allocation12 [shape = 'u8[4096]{0}', space=vmem, size = 0x1000, scoped, tag = 'output window, operand 1, single buffered']
    #allocation13 [shape = 's32[1]{0}', space=sflag, size = 0x4, scoped, tag = 'scoped memory for tpu_custom_call.1']
    %25 = vsyncpa [#allocation3], 0
    %26 = vsyncpa [#allocation6], 0
    %27 = vsyncpa [#allocation9], 0
    %28 = vsyncpa [#allocation4], 0
    %29 = vsyncpa [#allocation13], 0
    // Predicated region
    $region2: #{tpu_custom_call.1} parent=1 // pred_check
      _
    $region3: #{tpu_custom_call.1} parent=1 // pred_check_branch
      %31 = sbr.rel (0) target = $region5
    $region4: #{tpu_custom_call.1} parent=1 // pred_region
      %s33 = ssub.s32 128, 128
      %34 = vsyncadd [#allocation3], %s33
      %s36 = sshll.u32 [#allocation2], 4
      %s37 = int_to_ptr.vmem [resolvable:$true] %s36
      %39 = dma.hbm_to_vmem [thread:$0]  %s0, 128, %s37, [#allocation3]
    $region5: #{tpu_custom_call.1} parent=1 // pred_fallthru
      _
    // Predicated region
    $region6: #{tpu_custom_call.1} parent=1 // pred_check
      _
    $region7: #{tpu_custom_call.1} parent=1 // pred_check_branch
      %41 = sbr.rel (0) target = $region9
    $region8: #{tpu_custom_call.1} parent=1 // pred_region
      _
    $region9: #{tpu_custom_call.1} parent=1 // pred_fallthru
      _
    // Predicated region
    $region10: #{tpu_custom_call.1} parent=1 // pred_check
      _
    $region11: #{tpu_custom_call.1} parent=1 // pred_check_branch
      %43 = sbr.rel (0) target = $region13
    $region12: #{tpu_custom_call.1} parent=1 // pred_region
      _
    $region13: #{tpu_custom_call.1} parent=1 // pred_fallthru
      _
    // Predicated region
    $region14: #{tpu_custom_call.1} parent=1 // pred_check
      _
    $region15: #{tpu_custom_call.1} parent=1 // pred_check_branch
      %45 = sbr.rel (0) target = $region17
    $region16: #{tpu_custom_call.1} parent=1 // pred_region
      _
    $region17: #{tpu_custom_call.1} parent=1 // pred_fallthru
      _
    // Predicated region
    $region18: #{tpu_custom_call.1} parent=1 // pred_check
      _
    $region19: #{tpu_custom_call.1} parent=1 // pred_check_branch
      %47 = sbr.rel (0) target = $region21
    $region20: #{tpu_custom_call.1} parent=1 // pred_region
      _
    $region21: #{tpu_custom_call.1} parent=1 // pred_fallthru
      _
    // Predicated region
    $region22: #{tpu_custom_call.1} parent=1 // pred_check
      _
    $region23: #{tpu_custom_call.1} parent=1 // pred_check_branch
      %49 = sbr.rel (0) target = $region25
    $region24: #{tpu_custom_call.1} parent=1 // pred_region
      _
    $region25: #{tpu_custom_call.1} parent=1 // pred_fallthru
      _
    // Predicated region
    $region26: #{tpu_custom_call.1} parent=1 // pred_check
      _
    $region27: #{tpu_custom_call.1} parent=1 // pred_check_branch
      %51 = sbr.rel (0) target = $region29
    $region28: #{tpu_custom_call.1} parent=1 // pred_region
      %s53 = ssub.s32 16, 16
      %54 = vsyncadd [#allocation6], %s53
      %s56 = sshll.u32 [#allocation5], 4
      %s57 = int_to_ptr.vmem [resolvable:$true] %s56
      %59 = dma.hbm_to_vmem [thread:$0]  %s6, 16, %s57, [#allocation6]
    $region29: #{tpu_custom_call.1} parent=1 // pred_fallthru
      _
    // Predicated region
    $region30: #{tpu_custom_call.1} parent=1 // pred_check
      _
    $region31: #{tpu_custom_call.1} parent=1 // pred_check_branch
      %61 = sbr.rel (0) target = $region33
    $region32: #{tpu_custom_call.1} parent=1 // pred_region
      _
    $region33: #{tpu_custom_call.1} parent=1 // pred_fallthru
      _
    // Predicated region
    $region34: #{tpu_custom_call.1} parent=1 // pred_check
      _
    $region35: #{tpu_custom_call.1} parent=1 // pred_check_branch
      %63 = sbr.rel (0) target = $region37
    $region36: #{tpu_custom_call.1} parent=1 // pred_region
      %s65 = ssub.s32 16, 16
      %66 = vsyncadd [#allocation6], %s65
      %s68 = sshll.u32 [#allocation7], 4
      %s69 = int_to_ptr.vmem [resolvable:$true] %s68
      %71 = dma.hbm_to_vmem [thread:$0]  %s8, 16, %s69, [#allocation6]
    $region37: #{tpu_custom_call.1} parent=1 // pred_fallthru
      _
    // Predicated region
    $region38: #{tpu_custom_call.1} parent=1 // pred_check
      _
    $region39: #{tpu_custom_call.1} parent=1 // pred_check_branch
      %73 = sbr.rel (0) target = $region41
    $region40: #{tpu_custom_call.1} parent=1 // pred_region
      %s75 = ssub.s32 128, 128
      %76 = vsyncadd [#allocation9], %s75
      %s78 = sshll.u32 [#allocation8], 4
      %s79 = int_to_ptr.vmem [resolvable:$true] %s78
      %81 = dma.hbm_to_vmem [thread:$0]  %s9, 128, %s79, [#allocation9]
    $region41: #{tpu_custom_call.1} parent=1 // pred_fallthru
      _
    // Predicated region
    $region42: #{tpu_custom_call.1} parent=1 // pred_check
      _
    $region43: #{tpu_custom_call.1} parent=1 // pred_check_branch
      %83 = sbr.rel (0) target = $region45
    $region44: #{tpu_custom_call.1} parent=1 // pred_region
      %s85 = ssub.s32 128, 128
      %86 = vsyncadd [#allocation9], %s85
      %s88 = sshll.u32 [#allocation10], 4
      %s89 = int_to_ptr.vmem [resolvable:$true] %s88
      %91 = dma.hbm_to_vmem [thread:$0]  %s10, 128, %s89, [#allocation9]
    $region45: #{tpu_custom_call.1} parent=1 // pred_fallthru
      _
    // Predicated region
    $region46: #{tpu_custom_call.1} parent=1 // pred_check
      _
    $region47: #{tpu_custom_call.1} parent=1 // pred_check_branch
      %93 = sbr.rel (0) target = $region49
    $region48: #{tpu_custom_call.1} parent=1 // pred_region
      _
    $region49: #{tpu_custom_call.1} parent=1 // pred_fallthru
      _
    // Predicated region
    $region50: #{tpu_custom_call.1} parent=1 // pred_check
      _
    $region51: #{tpu_custom_call.1} parent=1 // pred_check_branch
      %95 = sbr.rel (0) target = $region53
    $region52: #{tpu_custom_call.1} parent=1 // pred_region
      _
    $region53: #{tpu_custom_call.1} parent=1 // pred_fallthru
      _
    // Predicated region
    $region54: #{tpu_custom_call.1} parent=1 // pred_check
      _
    $region55: #{tpu_custom_call.1} parent=1 // pred_check_branch
      %97 = sbr.rel (0) target = $region57
    $region56: #{tpu_custom_call.1} parent=1 // pred_region
      _
    $region57: #{tpu_custom_call.1} parent=1 // pred_fallthru
      _
    // Predicated region
    $region58: #{tpu_custom_call.1} parent=1 // pred_check
      _
    $region59: #{tpu_custom_call.1} parent=1 // pred_check_branch
      %99 = sbr.rel (0) target = $region61
    $region60: #{tpu_custom_call.1} parent=1 // pred_region
      _
    $region61: #{tpu_custom_call.1} parent=1 // pred_fallthru
      _
    // Predicated region
    $region62: #{tpu_custom_call.1} parent=1 // pred_check
      _
    $region63: #{tpu_custom_call.1} parent=1 // pred_check_branch
      %101 = sbr.rel (0) target = $region65
    $region64: #{tpu_custom_call.1} parent=1 // pred_region
      _
    $region65: #{tpu_custom_call.1} parent=1 // pred_fallthru
      _
    // Predicated region
    $region66: #{tpu_custom_call.1} parent=1 // pred_check
      _
    $region67: #{tpu_custom_call.1} parent=1 // pred_check_branch
      %103 = sbr.rel (0) target = $region69
    $region68: #{tpu_custom_call.1} parent=1 // pred_region
      _
    $region69: #{tpu_custom_call.1} parent=1 // pred_fallthru
      _
    // Predicated region
    $region70: #{tpu_custom_call.1} parent=1 // pred_check
      _
    $region71: #{tpu_custom_call.1} parent=1 // pred_check_branch
      %105 = sbr.rel (0) target = $region73
    $region72: #{tpu_custom_call.1} parent=1 // pred_region
      _
    $region73: #{tpu_custom_call.1} parent=1 // pred_fallthru
      _
    // Predicated region
    $region74: #{tpu_custom_call.1} parent=1 // pred_check
      _
    $region75: #{tpu_custom_call.1} parent=1 // pred_check_branch
      %107 = sbr.rel (0) target = $region77
    $region76: #{tpu_custom_call.1} parent=1 // pred_region
      %108 = dma.done [#allocation3], 128
    $region77: #{tpu_custom_call.1} parent=1 // pred_fallthru
      _
    // Predicated region
    $region78: #{tpu_custom_call.1} parent=1 // pred_check
      _
    $region79: #{tpu_custom_call.1} parent=1 // pred_check_branch
      %110 = sbr.rel (0) target = $region81
    $region80: #{tpu_custom_call.1} parent=1 // pred_region
      %111 = dma.done [#allocation6], 16
    $region81: #{tpu_custom_call.1} parent=1 // pred_fallthru
      _
    // Predicated region
    $region82: #{tpu_custom_call.1} parent=1 // pred_check
      _
    $region83: #{tpu_custom_call.1} parent=1 // pred_check_branch
      %113 = sbr.rel (0) target = $region85
    $region84: #{tpu_custom_call.1} parent=1 // pred_region
      %114 = dma.done [#allocation6], 16
    $region85: #{tpu_custom_call.1} parent=1 // pred_fallthru
      _
    // Predicated region
    $region86: #{tpu_custom_call.1} parent=1 // pred_check
      _
    $region87: #{tpu_custom_call.1} parent=1 // pred_check_branch
      %116 = sbr.rel (0) target = $region89
    $region88: #{tpu_custom_call.1} parent=1 // pred_region
      %117 = dma.done [#allocation9], 128
    $region89: #{tpu_custom_call.1} parent=1 // pred_fallthru
      _
    // Predicated region
    $region90: #{tpu_custom_call.1} parent=1 // pred_check
      _
    $region91: #{tpu_custom_call.1} parent=1 // pred_check_branch
      %119 = sbr.rel (0) target = $region93
    $region92: #{tpu_custom_call.1} parent=1 // pred_region
      %120 = dma.done [#allocation9], 128
    $region93: #{tpu_custom_call.1} parent=1 // pred_fallthru
      _
    %v121 = vld [vmem:[#allocation2] sm:$0xff]
    %v122 = vld [vmem:[%s1] sm:$0xff]
    %v123 = vld [vmem:[%s1 + $0x8] sm:$0xff]
    %v124 = vld [vmem:[%s1 + $0x10] sm:$0xff]
    %v125 = vld [vmem:[%s1 + $0x18] sm:$0xff]
    %v126 = vld [vmem:[%s1 + $0x20] sm:$0xff]
    %v127 = vld [vmem:[%s1 + $0x28] sm:$0xff]
    %v128 = vld [vmem:[%s1 + $0x30] sm:$0xff]
    %v129 = vld [vmem:[%s1 + $0x38] sm:$0xff]
    %v130 = vld [vmem:[%s2] sm:$0x1]
    %v132 = vlaneseq
    %v133 = vshrl.u32 %v132, 7
    %v134 = vsub.s32 0, %v133
    %v135 = vrot.slane %v130, %v134
    %vm137 = vcmask 523264
    %v139 = vsel %vm137, %v121, 0
    %141 = vmatprep.subr.mxu0 0.0
    %142 = vmatpush1.msra.mxu0 %v122
    %143 = vmatprep.subr.mxu0 0.0
    %144 = vmatpush1.msra.mxu0 %v123
    %145 = vmatprep.subr.mxu0 0.0
    %146 = vmatpush1.msra.mxu0 %v124
    %147 = vmatprep.subr.mxu0 0.0
    %148 = vmatpush1.msra.mxu0 %v125
    %149 = vmatprep.subr.mxu0 0.0
    %150 = vmatpush1.msra.mxu0 %v126
    %151 = vmatprep.subr.mxu0 0.0
    %152 = vmatpush1.msra.mxu0 %v127
    %153 = vmatprep.subr.mxu0 0.0
    %154 = vmatpush1.msra.mxu0 %v128
    %155 = vmatprep.subr.mxu0 0.0
    %156 = vmatpush1.msra.mxu0 %v129
    %157 = vmatprep.subr.mxu0 0.0
    %158 = vmatpush1.msra.mxu0 0.0
    %159 = vmatprep.subr.mxu0 0.0
    %160 = vmatpush1.msra.mxu0 0.0
    %161 = vmatprep.subr.mxu0 0.0
    %162 = vmatpush1.msra.mxu0 0.0
    %163 = vmatprep.subr.mxu0 0.0
    %164 = vmatpush1.msra.mxu0 0.0
    %165 = vmatprep.subr.mxu0 0.0
    %166 = vmatpush1.msra.mxu0 0.0
    %167 = vmatprep.subr.mxu0 0.0
    %168 = vmatpush1.msra.mxu0 0.0
    %169 = vmatprep.subr.mxu0 0.0
    %170 = vmatpush1.msra.mxu0 0.0
    %171 = vmatprep.subr.mxu0 0.0
    %172 = vmatpush1.msra.mxu0 0.0
    %173 = vmatprep.subr.mxu0 0.0
    %174 = vmatpush1.msra.mxu0 0.0
    %175 = vmatprep.subr.mxu0 0.0
    %176 = vmatpush1.msra.mxu0 0.0
    %177 = vmatprep.subr.mxu0 0.0
    %178 = vmatpush1.msra.mxu0 0.0
    %179 = vmatprep.subr.mxu0 0.0
    %180 = vmatpush1.msra.mxu0 0.0
    %181 = vmatprep.subr.mxu0 0.0
    %182 = vmatpush1.msra.mxu0 0.0
    %183 = vmatprep.subr.mxu0 0.0
    %184 = vmatpush1.msra.mxu0 0.0
    %185 = vmatprep.subr.mxu0 0.0
    %186 = vmatpush1.msra.mxu0 0.0
    %187 = vmatprep.subr.mxu0 0.0
    %188 = vmatpush1.msra.mxu0 0.0
    %189 = vmatprep.subr.mxu0 0.0
    %190 = vmatpush1.msra.mxu0 0.0
    %191 = vmatprep.subr.mxu0 0.0
    %192 = vmatpush1.msra.mxu0 0.0
    %193 = vmatprep.subr.mxu0 0.0
    %194 = vmatpush1.msra.mxu0 0.0
    %195 = vmatprep.subr.mxu0 0.0
    %196 = vmatpush1.msra.mxu0 0.0
    %197 = vmatprep.subr.mxu0 0.0
    %198 = vmatpush1.msra.mxu0 0.0
    %199 = vmatprep.subr.mxu0 0.0
    %200 = vmatpush1.msra.mxu0 0.0
    %201 = vmatprep.subr.mxu0 0.0
    %202 = vmatpush1.msra.mxu0 0.0
    %203 = vmatprep.subr.mxu0 0.0
    %204 = vmatpush1.msra.mxu0 0.0
    %205 = vmatprep.mubr.f32.mxu0 0.0
    %206 = vmatmul.mubr.f32.gmra.mrb[0].mxu0 %v139
    %v207 = vpop.f32.mrb[0].mxu0
    %v208 = vadd.f32 %v135, %v207
    %v209 = vpop.f32.mrb[0].mxu0
    %210 = vdwg.mxu0
    %v211 = vmax.f32 %v208, 0.0
    %v212 = vld [vmem:[%s3] sm:$0xff]
    %v213 = vld [vmem:[%s3 + $0x8] sm:$0xff]
    %v214 = vld [vmem:[%s3 + $0x10] sm:$0xff]
    %v215 = vld [vmem:[%s3 + $0x18] sm:$0xff]
    %v216 = vld [vmem:[%s4] sm:$0x1]
    %v218 = vlaneseq
    %v219 = vshrl.u32 %v218, 7
    %v220 = vsub.s32 0, %v219
    %v221 = vrot.slane %v216, %v220
    %vm223 = vcmask 261120
    %v225 = vsel %vm223, %v211, 0
    %227 = vmatprep.subr.mxu0 0.0
    %228 = vmatpush1.msra.mxu0 %v212
    %229 = vmatprep.subr.mxu0 0.0
    %230 = vmatpush1.msra.mxu0 %v213
    %231 = vmatprep.subr.mxu0 0.0
    %232 = vmatpush1.msra.mxu0 %v214
    %233 = vmatprep.subr.mxu0 0.0
    %234 = vmatpush1.msra.mxu0 %v215
    %235 = vmatprep.subr.mxu0 0.0
    %236 = vmatpush1.msra.mxu0 0.0
    %237 = vmatprep.subr.mxu0 0.0
    %238 = vmatpush1.msra.mxu0 0.0
    %239 = vmatprep.subr.mxu0 0.0
    %240 = vmatpush1.msra.mxu0 0.0
    %241 = vmatprep.subr.mxu0 0.0
    %242 = vmatpush1.msra.mxu0 0.0
    %243 = vmatprep.subr.mxu0 0.0
    %244 = vmatpush1.msra.mxu0 0.0
    %245 = vmatprep.subr.mxu0 0.0
    %246 = vmatpush1.msra.mxu0 0.0
    %247 = vmatprep.subr.mxu0 0.0
    %248 = vmatpush1.msra.mxu0 0.0
    %249 = vmatprep.subr.mxu0 0.0
    %250 = vmatpush1.msra.mxu0 0.0
    %251 = vmatprep.subr.mxu0 0.0
    %252 = vmatpush1.msra.mxu0 0.0
    %253 = vmatprep.subr.mxu0 0.0
    %254 = vmatpush1.msra.mxu0 0.0
    %255 = vmatprep.subr.mxu0 0.0
    %256 = vmatpush1.msra.mxu0 0.0
    %257 = vmatprep.subr.mxu0 0.0
    %258 = vmatpush1.msra.mxu0 0.0
    %259 = vmatprep.subr.mxu0 0.0
    %260 = vmatpush1.msra.mxu0 0.0
    %261 = vmatprep.subr.mxu0 0.0
    %262 = vmatpush1.msra.mxu0 0.0
    %263 = vmatprep.subr.mxu0 0.0
    %264 = vmatpush1.msra.mxu0 0.0
    %265 = vmatprep.subr.mxu0 0.0
    %266 = vmatpush1.msra.mxu0 0.0
    %267 = vmatprep.subr.mxu0 0.0
    %268 = vmatpush1.msra.mxu0 0.0
    %269 = vmatprep.subr.mxu0 0.0
    %270 = vmatpush1.msra.mxu0 0.0
    %271 = vmatprep.subr.mxu0 0.0
    %272 = vmatpush1.msra.mxu0 0.0
    %273 = vmatprep.subr.mxu0 0.0
    %274 = vmatpush1.msra.mxu0 0.0
    %275 = vmatprep.subr.mxu0 0.0
    %276 = vmatpush1.msra.mxu0 0.0
    %277 = vmatprep.subr.mxu0 0.0
    %278 = vmatpush1.msra.mxu0 0.0
    %279 = vmatprep.subr.mxu0 0.0
    %280 = vmatpush1.msra.mxu0 0.0
    %281 = vmatprep.subr.mxu0 0.0
    %282 = vmatpush1.msra.mxu0 0.0
    %283 = vmatprep.subr.mxu0 0.0
    %284 = vmatpush1.msra.mxu0 0.0
    %285 = vmatprep.subr.mxu0 0.0
    %286 = vmatpush1.msra.mxu0 0.0
    %287 = vmatprep.subr.mxu0 0.0
    %288 = vmatpush1.msra.mxu0 0.0
    %289 = vmatprep.subr.mxu0 0.0
    %290 = vmatpush1.msra.mxu0 0.0
    %291 = vmatprep.mubr.f32.mxu0 0.0
    %292 = vmatmul.mubr.f32.gmra.mrb[0].mxu0 %v225
    %v293 = vpop.f32.mrb[0].mxu0
    %v294 = vadd.f32 %v221, %v293
    %v295 = vpop.f32.mrb[0].mxu0
    %296 = vdwg.mxu0
    %v297 = vmax.f32 %v294, 0.0
    %v298 = vld [vmem:[%s5] sm:$0xff]
    %v299 = vld [vmem:[%s5 + $0x8] sm:$0xff]
    %v300 = vld [vmem:[%s5 + $0x10] sm:$0xff]
    %v301 = vld [vmem:[%s5 + $0x18] sm:$0xff]
    %v302 = vld [vmem:[#allocation5] sm:$0x1]
    %v304 = vlaneseq
    %v305 = vshrl.u32 %v304, 7
    %v306 = vsub.s32 0, %v305
    %v307 = vrot.slane %v302, %v306
    %v310 = vsel %vm223, %v297, 0
    %312 = vmatprep.subr.mxu0 0.0
    %313 = vmatpush1.msra.mxu0 %v298
    %314 = vmatprep.subr.mxu0 0.0
    %315 = vmatpush1.msra.mxu0 %v299
    %316 = vmatprep.subr.mxu0 0.0
    %317 = vmatpush1.msra.mxu0 %v300
    %318 = vmatprep.subr.mxu0 0.0
    %319 = vmatpush1.msra.mxu0 %v301
    %320 = vmatprep.subr.mxu0 0.0
    %321 = vmatpush1.msra.mxu0 0.0
    %322 = vmatprep.subr.mxu0 0.0
    %323 = vmatpush1.msra.mxu0 0.0
    %324 = vmatprep.subr.mxu0 0.0
    %325 = vmatpush1.msra.mxu0 0.0
    %326 = vmatprep.subr.mxu0 0.0
    %327 = vmatpush1.msra.mxu0 0.0
    %328 = vmatprep.subr.mxu0 0.0
    %329 = vmatpush1.msra.mxu0 0.0
    %330 = vmatprep.subr.mxu0 0.0
    %331 = vmatpush1.msra.mxu0 0.0
    %332 = vmatprep.subr.mxu0 0.0
    %333 = vmatpush1.msra.mxu0 0.0
    %334 = vmatprep.subr.mxu0 0.0
    %335 = vmatpush1.msra.mxu0 0.0
    %336 = vmatprep.subr.mxu0 0.0
    %337 = vmatpush1.msra.mxu0 0.0
    %338 = vmatprep.subr.mxu0 0.0
    %339 = vmatpush1.msra.mxu0 0.0
    %340 = vmatprep.subr.mxu0 0.0
    %341 = vmatpush1.msra.mxu0 0.0
    %342 = vmatprep.subr.mxu0 0.0
    %343 = vmatpush1.msra.mxu0 0.0
    %344 = vmatprep.subr.mxu0 0.0
    %345 = vmatpush1.msra.mxu0 0.0
    %346 = vmatprep.subr.mxu0 0.0
    %347 = vmatpush1.msra.mxu0 0.0
    %348 = vmatprep.subr.mxu0 0.0
    %349 = vmatpush1.msra.mxu0 0.0
    %350 = vmatprep.subr.mxu0 0.0
    %351 = vmatpush1.msra.mxu0 0.0
    %352 = vmatprep.subr.mxu0 0.0
    %353 = vmatpush1.msra.mxu0 0.0
    %354 = vmatprep.subr.mxu0 0.0
    %355 = vmatpush1.msra.mxu0 0.0
    %356 = vmatprep.subr.mxu0 0.0
    %357 = vmatpush1.msra.mxu0 0.0
    %358 = vmatprep.subr.mxu0 0.0
    %359 = vmatpush1.msra.mxu0 0.0
    %360 = vmatprep.subr.mxu0 0.0
    %361 = vmatpush1.msra.mxu0 0.0
    %362 = vmatprep.subr.mxu0 0.0
    %363 = vmatpush1.msra.mxu0 0.0
    %364 = vmatprep.subr.mxu0 0.0
    %365 = vmatpush1.msra.mxu0 0.0
    %366 = vmatprep.subr.mxu0 0.0
    %367 = vmatpush1.msra.mxu0 0.0
    %368 = vmatprep.subr.mxu0 0.0
    %369 = vmatpush1.msra.mxu0 0.0
    %370 = vmatprep.subr.mxu0 0.0
    %371 = vmatpush1.msra.mxu0 0.0
    %372 = vmatprep.subr.mxu0 0.0
    %373 = vmatpush1.msra.mxu0 0.0
    %374 = vmatprep.subr.mxu0 0.0
    %375 = vmatpush1.msra.mxu0 0.0
    %376 = vmatprep.mubr.f32.mxu0 0.0
    %377 = vmatmul.mubr.f32.gmra.mrb[0].mxu0 %v310
    %v378 = vpop.f32.mrb[0].mxu0
    %v379 = vadd.f32 %v307, %v378
    %v380 = vpop.f32.mrb[0].mxu0
    %381 = vdwg.mxu0
    %v382 = vmax.f32 %v379, 0.0
    %v383 = vld [vmem:[%s7] sm:$0xff]
    %v384 = vld [vmem:[%s7 + $0x8] sm:$0xff]
    %v385 = vld [vmem:[#allocation7] sm:$0x1]
    %v387 = vlaneseq
    %v388 = vshrl.u32 %v387, 7
    %v389 = vsub.s32 0, %v388
    %v390 = vrot.slane %v385, %v389
    %vm392 = vcmask 130048
    %v394 = vsel %vm392, %v382, 0
    %396 = vmatprep.subr.mxu0 0.0
    %397 = vmatpush1.msra.mxu0 %v383
    %398 = vmatprep.subr.mxu0 0.0
    %399 = vmatpush1.msra.mxu0 %v384
    %400 = vmatprep.subr.mxu0 0.0
    %401 = vmatpush1.msra.mxu0 0.0
    %402 = vmatprep.subr.mxu0 0.0
    %403 = vmatpush1.msra.mxu0 0.0
    %404 = vmatprep.subr.mxu0 0.0
    %405 = vmatpush1.msra.mxu0 0.0
    %406 = vmatprep.subr.mxu0 0.0
    %407 = vmatpush1.msra.mxu0 0.0
    %408 = vmatprep.subr.mxu0 0.0
    %409 = vmatpush1.msra.mxu0 0.0
    %410 = vmatprep.subr.mxu0 0.0
    %411 = vmatpush1.msra.mxu0 0.0
    %412 = vmatprep.subr.mxu0 0.0
    %413 = vmatpush1.msra.mxu0 0.0
    %414 = vmatprep.subr.mxu0 0.0
    %415 = vmatpush1.msra.mxu0 0.0
    %416 = vmatprep.subr.mxu0 0.0
    %417 = vmatpush1.msra.mxu0 0.0
    %418 = vmatprep.subr.mxu0 0.0
    %419 = vmatpush1.msra.mxu0 0.0
    %420 = vmatprep.subr.mxu0 0.0
    %421 = vmatpush1.msra.mxu0 0.0
    %422 = vmatprep.subr.mxu0 0.0
    %423 = vmatpush1.msra.mxu0 0.0
    %424 = vmatprep.subr.mxu0 0.0
    %425 = vmatpush1.msra.mxu0 0.0
    %426 = vmatprep.subr.mxu0 0.0
    %427 = vmatpush1.msra.mxu0 0.0
    %428 = vmatprep.subr.mxu0 0.0
    %429 = vmatpush1.msra.mxu0 0.0
    %430 = vmatprep.subr.mxu0 0.0
    %431 = vmatpush1.msra.mxu0 0.0
    %432 = vmatprep.subr.mxu0 0.0
    %433 = vmatpush1.msra.mxu0 0.0
    %434 = vmatprep.subr.mxu0 0.0
    %435 = vmatpush1.msra.mxu0 0.0
    %436 = vmatprep.subr.mxu0 0.0
    %437 = vmatpush1.msra.mxu0 0.0
    %438 = vmatprep.subr.mxu0 0.0
    %439 = vmatpush1.msra.mxu0 0.0
    %440 = vmatprep.subr.mxu0 0.0
    %441 = vmatpush1.msra.mxu0 0.0
    %442 = vmatprep.subr.mxu0 0.0
    %443 = vmatpush1.msra.mxu0 0.0
    %444 = vmatprep.subr.mxu0 0.0
    %445 = vmatpush1.msra.mxu0 0.0
    %446 = vmatprep.subr.mxu0 0.0
    %447 = vmatpush1.msra.mxu0 0.0
    %448 = vmatprep.subr.mxu0 0.0
    %449 = vmatpush1.msra.mxu0 0.0
    %450 = vmatprep.subr.mxu0 0.0
    %451 = vmatpush1.msra.mxu0 0.0
    %452 = vmatprep.subr.mxu0 0.0
    %453 = vmatpush1.msra.mxu0 0.0
    %454 = vmatprep.subr.mxu0 0.0
    %455 = vmatpush1.msra.mxu0 0.0
    %456 = vmatprep.subr.mxu0 0.0
    %457 = vmatpush1.msra.mxu0 0.0
    %458 = vmatprep.subr.mxu0 0.0
    %459 = vmatpush1.msra.mxu0 0.0
    %460 = vmatprep.mubr.f32.mxu0 0.0
    %461 = vmatmul.mubr.f32.gmra.mrb[0].mxu0 %v394
    %v462 = vpop.f32.mrb[0].mxu0
    %v463 = vadd.f32 %v390, %v462
    %v464 = vpop.f32.mrb[0].mxu0
    %465 = vdwg.mxu0
    %v466 = vmul.f32 %v463, 0.5
    %v467 = vmul.f32 %v466, 1.442695
    %v468 = vpow.pop %v467
    %v469 = vld [vmem:[#allocation8] sm:$0xff]
    %471 = vrot.lane.b32.xlu0 %v469, 8
    %v472 = vpop.permute.xlu0 %471
    %v474 = vmul.f32 %v468, %v472
    %476 = vrot.lane.b32.xlu0 %v474, 120
    %v477 = vpop.permute.xlu0 %476
    %v479 = vadd.f32 %v463, %v477
    %v480 = vld [vmem:[#allocation10] sm:$0xff]
    %v481 = vld [vmem:[%s11] sm:$0x1]
    %v483 = vlaneseq
    %v484 = vshrl.u32 %v483, 7
    %v485 = vsub.s32 0, %v484
    %v486 = vrot.slane %v481, %v485
    %vm488 = vcmask 64512
    %v490 = vsel %vm488, %v479, 0
    %492 = vmatprep.subr.mxu0 0.0
    %493 = vmatpush1.msra.mxu0 %v480
    %494 = vmatprep.subr.mxu0 0.0
    %495 = vmatpush1.msra.mxu0 0.0
    %496 = vmatprep.subr.mxu0 0.0
    %497 = vmatpush1.msra.mxu0 0.0
    %498 = vmatprep.subr.mxu0 0.0
    %499 = vmatpush1.msra.mxu0 0.0
    %500 = vmatprep.subr.mxu0 0.0
    %501 = vmatpush1.msra.mxu0 0.0
    %502 = vmatprep.subr.mxu0 0.0
    %503 = vmatpush1.msra.mxu0 0.0
    %504 = vmatprep.subr.mxu0 0.0
    %505 = vmatpush1.msra.mxu0 0.0
    %506 = vmatprep.subr.mxu0 0.0
    %507 = vmatpush1.msra.mxu0 0.0
    %508 = vmatprep.subr.mxu0 0.0
    %509 = vmatpush1.msra.mxu0 0.0
    %510 = vmatprep.subr.mxu0 0.0
    %511 = vmatpush1.msra.mxu0 0.0
    %512 = vmatprep.subr.mxu0 0.0
    %513 = vmatpush1.msra.mxu0 0.0
    %514 = vmatprep.subr.mxu0 0.0
    %515 = vmatpush1.msra.mxu0 0.0
    %516 = vmatprep.subr.mxu0 0.0
    %517 = vmatpush1.msra.mxu0 0.0
    %518 = vmatprep.subr.mxu0 0.0
    %519 = vmatpush1.msra.mxu0 0.0
    %520 = vmatprep.subr.mxu0 0.0
    %521 = vmatpush1.msra.mxu0 0.0
    %522 = vmatprep.subr.mxu0 0.0
    %523 = vmatpush1.msra.mxu0 0.0
    %524 = vmatprep.subr.mxu0 0.0
    %525 = vmatpush1.msra.mxu0 0.0
    %526 = vmatprep.subr.mxu0 0.0
    %527 = vmatpush1.msra.mxu0 0.0
    %528 = vmatprep.subr.mxu0 0.0
    %529 = vmatpush1.msra.mxu0 0.0
    %530 = vmatprep.subr.mxu0 0.0
    %531 = vmatpush1.msra.mxu0 0.0
    %532 = vmatprep.subr.mxu0 0.0
    %533 = vmatpush1.msra.mxu0 0.0
    %534 = vmatprep.subr.mxu0 0.0
    %535 = vmatpush1.msra.mxu0 0.0
    %536 = vmatprep.subr.mxu0 0.0
    %537 = vmatpush1.msra.mxu0 0.0
    %538 = vmatprep.subr.mxu0 0.0
    %539 = vmatpush1.msra.mxu0 0.0
    %540 = vmatprep.subr.mxu0 0.0
    %541 = vmatpush1.msra.mxu0 0.0
    %542 = vmatprep.subr.mxu0 0.0
    %543 = vmatpush1.msra.mxu0 0.0
    %544 = vmatprep.subr.mxu0 0.0
    %545 = vmatpush1.msra.mxu0 0.0
    %546 = vmatprep.subr.mxu0 0.0
    %547 = vmatpush1.msra.mxu0 0.0
    %548 = vmatprep.subr.mxu0 0.0
    %549 = vmatpush1.msra.mxu0 0.0
    %550 = vmatprep.subr.mxu0 0.0
    %551 = vmatpush1.msra.mxu0 0.0
    %552 = vmatprep.subr.mxu0 0.0
    %553 = vmatpush1.msra.mxu0 0.0
    %554 = vmatprep.subr.mxu0 0.0
    %555 = vmatpush1.msra.mxu0 0.0
    %556 = vmatprep.mubr.f32.mxu0 0.0
    %557 = vmatmul.mubr.f32.gmra.mrb[0].mxu0 %v490
    %v558 = vpop.f32.mrb[0].mxu0
    %v559 = vadd.f32 %v486, %v558
    %v560 = vpop.f32.mrb[0].mxu0
    %561 = vdwg.mxu0
    %v562 = vmax.f32 %v559, 0.0
    %v563 = vld [vmem:[%s12] sm:$0xff]
    %v564 = vld [vmem:[%s12 + $0x8] sm:$0xff]
    %v565 = vld [vmem:[%s13] sm:$0x1]
    %v567 = vlaneseq
    %v568 = vshrl.u32 %v567, 7
    %v569 = vsub.s32 0, %v568
    %v570 = vrot.slane %v565, %v569
    %v573 = vsel %vm392, %v562, 0
    %575 = vmatprep.subr.mxu0 0.0
    %576 = vmatpush1.msra.mxu0 %v563
    %577 = vmatprep.subr.mxu0 0.0
    %578 = vmatpush1.msra.mxu0 %v564
    %579 = vmatprep.subr.mxu0 0.0
    %580 = vmatpush1.msra.mxu0 0.0
    %581 = vmatprep.subr.mxu0 0.0
    %582 = vmatpush1.msra.mxu0 0.0
    %583 = vmatprep.subr.mxu0 0.0
    %584 = vmatpush1.msra.mxu0 0.0
    %585 = vmatprep.subr.mxu0 0.0
    %586 = vmatpush1.msra.mxu0 0.0
    %587 = vmatprep.subr.mxu0 0.0
    %588 = vmatpush1.msra.mxu0 0.0
    %589 = vmatprep.subr.mxu0 0.0
    %590 = vmatpush1.msra.mxu0 0.0
    %591 = vmatprep.subr.mxu0 0.0
    %592 = vmatpush1.msra.mxu0 0.0
    %593 = vmatprep.subr.mxu0 0.0
    %594 = vmatpush1.msra.mxu0 0.0
    %595 = vmatprep.subr.mxu0 0.0
    %596 = vmatpush1.msra.mxu0 0.0
    %597 = vmatprep.subr.mxu0 0.0
    %598 = vmatpush1.msra.mxu0 0.0
    %599 = vmatprep.subr.mxu0 0.0
    %600 = vmatpush1.msra.mxu0 0.0
    %601 = vmatprep.subr.mxu0 0.0
    %602 = vmatpush1.msra.mxu0 0.0
    %603 = vmatprep.subr.mxu0 0.0
    %604 = vmatpush1.msra.mxu0 0.0
    %605 = vmatprep.subr.mxu0 0.0
    %606 = vmatpush1.msra.mxu0 0.0
    %607 = vmatprep.subr.mxu0 0.0
    %608 = vmatpush1.msra.mxu0 0.0
    %609 = vmatprep.subr.mxu0 0.0
    %610 = vmatpush1.msra.mxu0 0.0
    %611 = vmatprep.subr.mxu0 0.0
    %612 = vmatpush1.msra.mxu0 0.0
    %613 = vmatprep.subr.mxu0 0.0
    %614 = vmatpush1.msra.mxu0 0.0
    %615 = vmatprep.subr.mxu0 0.0
    %616 = vmatpush1.msra.mxu0 0.0
    %617 = vmatprep.subr.mxu0 0.0
    %618 = vmatpush1.msra.mxu0 0.0
    %619 = vmatprep.subr.mxu0 0.0
    %620 = vmatpush1.msra.mxu0 0.0
    %621 = vmatprep.subr.mxu0 0.0
    %622 = vmatpush1.msra.mxu0 0.0
    %623 = vmatprep.subr.mxu0 0.0
    %624 = vmatpush1.msra.mxu0 0.0
    %625 = vmatprep.subr.mxu0 0.0
    %626 = vmatpush1.msra.mxu0 0.0
    %627 = vmatprep.subr.mxu0 0.0
    %628 = vmatpush1.msra.mxu0 0.0
    %629 = vmatprep.subr.mxu0 0.0
    %630 = vmatpush1.msra.mxu0 0.0
    %631 = vmatprep.subr.mxu0 0.0
    %632 = vmatpush1.msra.mxu0 0.0
    %633 = vmatprep.subr.mxu0 0.0
    %634 = vmatpush1.msra.mxu0 0.0
    %635 = vmatprep.subr.mxu0 0.0
    %636 = vmatpush1.msra.mxu0 0.0
    %637 = vmatprep.subr.mxu0 0.0
    %638 = vmatpush1.msra.mxu0 0.0
    %639 = vmatprep.mubr.f32.mxu0 0.0
    %640 = vmatmul.mubr.f32.gmra.mrb[0].mxu0 %v573
    %v641 = vpop.f32.mrb[0].mxu0
    %v642 = vadd.f32 %v570, %v641
    %v643 = vpop.f32.mrb[0].mxu0
    %644 = vdwg.mxu0
    %v645 = vmax.f32 %v642, 0.0
    %v646 = vld [vmem:[%s14] sm:$0xff]
    %v647 = vld [vmem:[%s14 + $0x8] sm:$0xff]
    %v648 = vld [vmem:[%s14 + $0x10] sm:$0xff]
    %v649 = vld [vmem:[%s14 + $0x18] sm:$0xff]
    %v650 = vld [vmem:[%s15] sm:$0x1]
    %v652 = vlaneseq
    %v653 = vshrl.u32 %v652, 7
    %v654 = vsub.s32 0, %v653
    %v655 = vrot.slane %v650, %v654
    %v658 = vsel %vm223, %v645, 0
    %660 = vmatprep.subr.mxu0 0.0
    %661 = vmatpush1.msra.mxu0 %v646
    %662 = vmatprep.subr.mxu0 0.0
    %663 = vmatpush1.msra.mxu0 %v647
    %664 = vmatprep.subr.mxu0 0.0
    %665 = vmatpush1.msra.mxu0 %v648
    %666 = vmatprep.subr.mxu0 0.0
    %667 = vmatpush1.msra.mxu0 %v649
    %668 = vmatprep.subr.mxu0 0.0
    %669 = vmatpush1.msra.mxu0 0.0
    %670 = vmatprep.subr.mxu0 0.0
    %671 = vmatpush1.msra.mxu0 0.0
    %672 = vmatprep.subr.mxu0 0.0
    %673 = vmatpush1.msra.mxu0 0.0
    %674 = vmatprep.subr.mxu0 0.0
    %675 = vmatpush1.msra.mxu0 0.0
    %676 = vmatprep.subr.mxu0 0.0
    %677 = vmatpush1.msra.mxu0 0.0
    %678 = vmatprep.subr.mxu0 0.0
    %679 = vmatpush1.msra.mxu0 0.0
    %680 = vmatprep.subr.mxu0 0.0
    %681 = vmatpush1.msra.mxu0 0.0
    %682 = vmatprep.subr.mxu0 0.0
    %683 = vmatpush1.msra.mxu0 0.0
    %684 = vmatprep.subr.mxu0 0.0
    %685 = vmatpush1.msra.mxu0 0.0
    %686 = vmatprep.subr.mxu0 0.0
    %687 = vmatpush1.msra.mxu0 0.0
    %688 = vmatprep.subr.mxu0 0.0
    %689 = vmatpush1.msra.mxu0 0.0
    %690 = vmatprep.subr.mxu0 0.0
    %691 = vmatpush1.msra.mxu0 0.0
    %692 = vmatprep.subr.mxu0 0.0
    %693 = vmatpush1.msra.mxu0 0.0
    %694 = vmatprep.subr.mxu0 0.0
    %695 = vmatpush1.msra.mxu0 0.0
    %696 = vmatprep.subr.mxu0 0.0
    %697 = vmatpush1.msra.mxu0 0.0
    %698 = vmatprep.subr.mxu0 0.0
    %699 = vmatpush1.msra.mxu0 0.0
    %700 = vmatprep.subr.mxu0 0.0
    %701 = vmatpush1.msra.mxu0 0.0
    %702 = vmatprep.subr.mxu0 0.0
    %703 = vmatpush1.msra.mxu0 0.0
    %704 = vmatprep.subr.mxu0 0.0
    %705 = vmatpush1.msra.mxu0 0.0
    %706 = vmatprep.subr.mxu0 0.0
    %707 = vmatpush1.msra.mxu0 0.0
    %708 = vmatprep.subr.mxu0 0.0
    %709 = vmatpush1.msra.mxu0 0.0
    %710 = vmatprep.subr.mxu0 0.0
    %711 = vmatpush1.msra.mxu0 0.0
    %712 = vmatprep.subr.mxu0 0.0
    %713 = vmatpush1.msra.mxu0 0.0
    %714 = vmatprep.subr.mxu0 0.0
    %715 = vmatpush1.msra.mxu0 0.0
    %716 = vmatprep.subr.mxu0 0.0
    %717 = vmatpush1.msra.mxu0 0.0
    %718 = vmatprep.subr.mxu0 0.0
    %719 = vmatpush1.msra.mxu0 0.0
    %720 = vmatprep.subr.mxu0 0.0
    %721 = vmatpush1.msra.mxu0 0.0
    %722 = vmatprep.subr.mxu0 0.0
    %723 = vmatpush1.msra.mxu0 0.0
    %724 = vmatprep.mubr.f32.mxu0 0.0
    %725 = vmatmul.mubr.f32.gmra.mrb[0].mxu0 %v658
    %v726 = vpop.f32.mrb[0].mxu0
    %v727 = vadd.f32 %v655, %v726
    %v728 = vpop.f32.mrb[0].mxu0
    %729 = vdwg.mxu0
    %v730 = vmax.f32 %v727, 0.0
    %v731 = vld [vmem:[%s16] sm:$0xff]
    %v732 = vld [vmem:[%s16 + $0x8] sm:$0xff]
    %v733 = vld [vmem:[%s16 + $0x10] sm:$0xff]
    %v734 = vld [vmem:[%s16 + $0x18] sm:$0xff]
    %v735 = vld [vmem:[%s17] sm:$0x1]
    %v737 = vlaneseq
    %v738 = vshrl.u32 %v737, 7
    %v739 = vsub.s32 0, %v738
    %v740 = vrot.slane %v735, %v739
    %v743 = vsel %vm223, %v730, 0
    %745 = vmatprep.subr.mxu0 0.0
    %746 = vmatpush1.msra.mxu0 %v731
    %747 = vmatprep.subr.mxu0 0.0
    %748 = vmatpush1.msra.mxu0 %v732
    %749 = vmatprep.subr.mxu0 0.0
    %750 = vmatpush1.msra.mxu0 %v733
    %751 = vmatprep.subr.mxu0 0.0
    %752 = vmatpush1.msra.mxu0 %v734
    %753 = vmatprep.subr.mxu0 0.0
    %754 = vmatpush1.msra.mxu0 0.0
    %755 = vmatprep.subr.mxu0 0.0
    %756 = vmatpush1.msra.mxu0 0.0
    %757 = vmatprep.subr.mxu0 0.0
    %758 = vmatpush1.msra.mxu0 0.0
    %759 = vmatprep.subr.mxu0 0.0
    %760 = vmatpush1.msra.mxu0 0.0
    %761 = vmatprep.subr.mxu0 0.0
    %762 = vmatpush1.msra.mxu0 0.0
    %763 = vmatprep.subr.mxu0 0.0
    %764 = vmatpush1.msra.mxu0 0.0
    %765 = vmatprep.subr.mxu0 0.0
    %766 = vmatpush1.msra.mxu0 0.0
    %767 = vmatprep.subr.mxu0 0.0
    %768 = vmatpush1.msra.mxu0 0.0
    %769 = vmatprep.subr.mxu0 0.0
    %770 = vmatpush1.msra.mxu0 0.0
    %771 = vmatprep.subr.mxu0 0.0
    %772 = vmatpush1.msra.mxu0 0.0
    %773 = vmatprep.subr.mxu0 0.0
    %774 = vmatpush1.msra.mxu0 0.0
    %775 = vmatprep.subr.mxu0 0.0
    %776 = vmatpush1.msra.mxu0 0.0
    %777 = vmatprep.subr.mxu0 0.0
    %778 = vmatpush1.msra.mxu0 0.0
    %779 = vmatprep.subr.mxu0 0.0
    %780 = vmatpush1.msra.mxu0 0.0
    %781 = vmatprep.subr.mxu0 0.0
    %782 = vmatpush1.msra.mxu0 0.0
    %783 = vmatprep.subr.mxu0 0.0
    %784 = vmatpush1.msra.mxu0 0.0
    %785 = vmatprep.subr.mxu0 0.0
    %786 = vmatpush1.msra.mxu0 0.0
    %787 = vmatprep.subr.mxu0 0.0
    %788 = vmatpush1.msra.mxu0 0.0
    %789 = vmatprep.subr.mxu0 0.0
    %790 = vmatpush1.msra.mxu0 0.0
    %791 = vmatprep.subr.mxu0 0.0
    %792 = vmatpush1.msra.mxu0 0.0
    %793 = vmatprep.subr.mxu0 0.0
    %794 = vmatpush1.msra.mxu0 0.0
    %795 = vmatprep.subr.mxu0 0.0
    %796 = vmatpush1.msra.mxu0 0.0
    %797 = vmatprep.subr.mxu0 0.0
    %798 = vmatpush1.msra.mxu0 0.0
    %799 = vmatprep.subr.mxu0 0.0
    %800 = vmatpush1.msra.mxu0 0.0
    %801 = vmatprep.subr.mxu0 0.0
    %802 = vmatpush1.msra.mxu0 0.0
    %803 = vmatprep.subr.mxu0 0.0
    %804 = vmatpush1.msra.mxu0 0.0
    %805 = vmatprep.subr.mxu0 0.0
    %806 = vmatpush1.msra.mxu0 0.0
    %807 = vmatprep.subr.mxu0 0.0
    %808 = vmatpush1.msra.mxu0 0.0
    %809 = vmatprep.mubr.f32.mxu0 0.0
    %810 = vmatmul.mubr.f32.gmra.mrb[0].mxu0 %v743
    %v811 = vpop.f32.mrb[0].mxu0
    %v812 = vadd.f32 %v740, %v811
    %v813 = vpop.f32.mrb[0].mxu0
    %814 = vdwg.mxu0
    %v815 = vxor.u32 %v812, 2147483648
    %v816 = vmul.f32 %v815, 1.442695
    %v817 = vpow.pop %v816
    %v818 = vadd.f32 %v817, 1.0
    %v819 = vrcp.pop %v818
    %v820 = vmul.f32 1.0, %v819
    %821 = vst.msk [vmem:[#allocation11] sm:$0xff] %vm137, %v820
    %823 = vrot.lane.b32.xlu0 %v463, 8
    %v824 = vpop.permute.xlu0 %823
    %v826 = vsel %vm488, %v479, %v824
    %v827 = vsel %vm392, %v826, %v824
    %vm828 = vcmask 195584
    %829 = vst.msk [vmem:[#allocation12] sm:$0xff] %vm828, %v827
    // Predicated region
    $region94: #{tpu_custom_call.1} parent=1 // pred_check
      _
    $region95: #{tpu_custom_call.1} parent=1 // pred_check_branch
      %831 = sbr.rel (0) target = $region97
    $region96: #{tpu_custom_call.1} parent=1 // pred_region
      %s833 = ssub.s32 128, 128
      %834 = vsyncadd [#allocation4], %s833
      %s836 = sshll.u32 [#allocation11], 4
      %s837 = int_to_ptr.vmem [resolvable:$true] %s836
      %839 = dma.vmem_to_hbm [thread:$0]  %s837, 128, %s18, [#allocation4]
    $region97: #{tpu_custom_call.1} parent=1 // pred_fallthru
      _
    // Predicated region
    $region98: #{tpu_custom_call.1} parent=1 // pred_check
      _
    $region99: #{tpu_custom_call.1} parent=1 // pred_check_branch
      %841 = sbr.rel (0) target = $region101
    $region100: #{tpu_custom_call.1} parent=1 // pred_region
      %s843 = ssub.s32 128, 128
      %844 = vsyncadd [#allocation13], %s843
      %s846 = sshll.u32 [#allocation12], 4
      %s847 = int_to_ptr.vmem [resolvable:$true] %s846
      %849 = dma.vmem_to_hbm [thread:$0]  %s847, 128, %s19, [#allocation13]
    $region101: #{tpu_custom_call.1} parent=1 // pred_fallthru
      _
    // Predicated region
    $region102: #{tpu_custom_call.1} parent=1 // pred_check
      _
    $region103: #{tpu_custom_call.1} parent=1 // pred_check_branch
      %851 = sbr.rel (0) target = $region105
    $region104: #{tpu_custom_call.1} parent=1 // pred_region
      %852 = dma.done [#allocation4], 128
    $region105: #{tpu_custom_call.1} parent=1 // pred_fallthru
      _
    // Predicated region
    $region106: #{tpu_custom_call.1} parent=1 // pred_check
      _
    $region107: #{tpu_custom_call.1} parent=1 // pred_check_branch
      %854 = sbr.rel (0) target = $region109
    $region108: #{tpu_custom_call.1} parent=1 // pred_region
      %855 = dma.done [#allocation13], 128
    $region109: #{tpu_custom_call.1} parent=1 // pred_fallthru
      _
    %856 = vsyncpa [#allocation3], 1
    %857 = vsyncpa [#allocation6], 1
    %858 = vsyncpa [#allocation9], 1
    %859 = vsyncpa [#allocation4], 1
    %860 = vsyncpa [#allocation13], 1

</llo_original>
